<compile_context>
chip_gen: v7x
topology: tpu7x:2x2x1
jax: 0.10.0
libtpu: 0.0.40
codegen_flags: <defaults>
</compile_context>

<pallas_src>
import functools

import jax
import jax.numpy as jnp
from jax.experimental import pallas as pl
from jax.experimental.pallas import tpu as pltpu


def _dma_copy_kernel(rows_per_step, x_hbm, o_hbm, sem):
    """Copy `rows_per_step` full rows HBM -> HBM for this grid step."""
    i = pl.program_id(0)
    start = pl.multiple_of(i * rows_per_step, rows_per_step)
    cp = pltpu.make_async_copy(
        x_hbm.at[pl.ds(start, rows_per_step)],
        o_hbm.at[pl.ds(start, rows_per_step)],
        sem,
    )
    cp.start()
    cp.wait()


def _num_chunks(b, itemsize):
    """Largest chunk count <= 8 keeping row-chunk starts sublane/dtype aligned.

    Falls back to 1 (single full-buffer DMA) when B is small or unaligned —
    offset-0 full copies have no alignment constraints at all.
    """
    # Packed sublane tile: 8 rows for f32, 16 for bf16, 32 for int8/fp8.
    sub = max(8, 32 // max(int(itemsize), 1))
    for g in (8, 4, 2):
        if b % g == 0 and (b // g) % sub == 0:
            return g
    return 1


@jax.jit
def flatten(x):
    """Pallas equivalent of Flatten: (B, d1, d2, ...) -> (B, d1*d2*...)."""
    B = x.shape[0]
    flat = 1
    for d in x.shape[1:]:
        flat *= d

    # Metadata-only relayout under XLA for a contiguous array.
    x2 = x.reshape(B, flat)

    itemsize = jnp.dtype(x.dtype).itemsize
    G = _num_chunks(B, itemsize)
    rows = B // G
    total_bytes = B * flat * itemsize

    kernel = functools.partial(_dma_copy_kernel, rows)

    return pl.pallas_call(
        kernel,
        out_shape=jax.ShapeDtypeStruct((B, flat), x.dtype),
        grid_spec=pltpu.PrefetchScalarGridSpec(
            num_scalar_prefetch=0,
            grid=(G,),
            # Raw HBM refs: no auto-DMA, no VMEM staging.
            in_specs=[pl.BlockSpec(memory_space=pl.ANY)],
            out_specs=pl.BlockSpec(memory_space=pl.ANY),
            scratch_shapes=[pltpu.SemaphoreType.DMA],
        ),
        compiler_params=pltpu.CompilerParams(
            dimension_semantics=("parallel",),
        ),
        cost_estimate=pl.CostEstimate(
            flops=0, transcendentals=0, bytes_accessed=2 * total_bytes
        ),
    )(x2)


if __name__ == "__main__":
    key = jax.random.PRNGKey(0)
    # Small NCHW input consistent with a conv backbone feature map.
    x = jax.random.normal(key, (2, 4, 16, 16), dtype=jnp.float32)

    out = flatten(x)
    jax.block_until_ready(out)

    # Correctness check against plain JAX reshape (same semantics as torch).
    ref = x.reshape(x.shape[0], -1)
    assert out.shape == (2, 4 * 16 * 16), out.shape
    assert out.dtype == x.dtype
    assert jnp.array_equal(out, ref)

    print("KERNEL_OK")
</pallas_src>

<mosaic_0001>
module attributes {stable_mosaic.version = 11 : i64} {
  func.func @_dma_copy_kernel(%arg0: i32, %arg1: memref<2x1024xf32, #tpu.memory_space<any>>, %arg2: memref<2x1024xf32, #tpu.memory_space<any>>, %arg3: memref<!tpu.dma_semaphore, #tpu.memory_space<semaphore_mem>>) attributes {dimension_semantics = [#tpu.dimension_semantics<parallel>], iteration_bounds = array<i64: 1>, scalar_prefetch = 0 : i64, scratch_operands = 1 : i64, tpu.core_type = #tpu.core_type<tc>, window_params = [{}, {}]} {
    %c2_i32 = arith.constant 2 : i32
    %0 = arith.muli %arg0, %c2_i32 : i32
    %1 = tpu.assume_multiple %0, 2 : i32
    %c0_i32 = arith.constant 0 : i32
    %2 = tpu.memref_slice %arg1[%1, %c0_i32] : memref<2x1024xf32, #tpu.memory_space<any>> -> memref<2x1024xf32, #tpu.memory_space<any>>
    %c0_i32_0 = arith.constant 0 : i32
    %3 = tpu.memref_slice %arg2[%1, %c0_i32_0] : memref<2x1024xf32, #tpu.memory_space<any>> -> memref<2x1024xf32, #tpu.memory_space<any>>
    tpu.enqueue_dma source(%2 : memref<2x1024xf32, #tpu.memory_space<any>>) target(%3 : memref<2x1024xf32, #tpu.memory_space<any>>) target_semaphore(%arg3 : memref<!tpu.dma_semaphore, #tpu.memory_space<semaphore_mem>>)
    %c0_i32_1 = arith.constant 0 : i32
    %4 = tpu.memref_slice %arg1[%1, %c0_i32_1] : memref<2x1024xf32, #tpu.memory_space<any>> -> memref<2x1024xf32, #tpu.memory_space<any>>
    %c0_i32_2 = arith.constant 0 : i32
    %5 = tpu.memref_slice %arg2[%1, %c0_i32_2] : memref<2x1024xf32, #tpu.memory_space<any>> -> memref<2x1024xf32, #tpu.memory_space<any>>
    tpu.wait_dma2 semaphore(%arg3 : memref<!tpu.dma_semaphore, #tpu.memory_space<semaphore_mem>>) src(%4 : memref<2x1024xf32, #tpu.memory_space<any>>) dst(%5 : memref<2x1024xf32, #tpu.memory_space<any>>)
    return
  }
}

</mosaic_0001>

<llo_original>
// kernel: flatten.1
$region0: #{flatten.1}
  #allocation0 [shape = 'u32[]', space=smem, size = 0x4, offset = 0x4, fixed_abs, tag = 'smem constant byte address 0x4 - core index']
  #allocation1 [shape = 'u32[144,128]{1,0:T(1,128)}', space=vmem, size = 0x12000, scoped, tag = 'internal scratch']
  #allocation2 [shape = 's32[1]{0}', space=sflag, size = 0x4, scoped, tag = 'scratch operand']
  #allocation3 [shape = 's32[]', space=sflag, size = 0x4, offset = 0, fixed_abs, tag = 'sflag constant byte address 0x0 - dummy sync flag']
  #allocation4 [shape = 's32[]', space=sflag, size = 0x4, offset = 0, fixed_abs, tag = 'sflag constant byte address 0x0 - dummy sync flag']
  #allocation5 [shape = 'u32[]', space=smem, size = 0x4, offset = 0x44, fixed_abs, tag = 'smem constant byte address 0x44 - assertion arg 0']
  #allocation6 [shape = 'u32[]', space=smem, size = 0x4, offset = 0x48, fixed_abs, tag = 'smem constant byte address 0x48 - assertion arg 1']
  %s0 = inlined_call_operand.vmem [shape: f32[2,1024], index: 0, kind: input, shape index: {}]
  %s1 = inlined_call_operand.hbm [shape: f32[2,1024], index: 1, kind: output, shape index: {}]
  %s2 = sld [smem:[#allocation0]]
  $region6: #{flatten.1} parent=0
    _
  %s4 = ssub.s32 1, %s2
  %s5 = scalar_select 0, %s4, %s2
  %s6 = smul.u32 0, 2
  %s7 = sshra.s32 %s6, 1
  %s8 = sand.u32 %s6, 1
  %s9 = smul.u32 %s7, 8
  %s10 = smul.addr %s9, 2
  %s11 = scalar_lea.vmem %s0, %s10
  %s12 = smul.addr %s9, 32
  %s13 = scalar_lea.hbm %s1, %s12
  // Predicated region
  $region2: #{flatten.1} parent=0 // pred_check
    _
  $region3: #{flatten.1} parent=0 // pred_check_branch
    %15 = sbr.rel target = $region5
  $region4: #{flatten.1} parent=0 // pred_region
    %16 = sst [smem:[#allocation5]] [#allocation4]
    %17 = sst [smem:[#allocation6]] [#allocation3]
  $region5: #{flatten.1} parent=0 // pred_fallthru
    _
  %19 = shalt.err (0)
  %s21 = sshll.u32 %s11, 4
  %s22 = int_to_ptr.vmem [resolvable:$true] %s21
  %24 = dma.vmem_to_hbm [thread:$0]  %s22, 256, %s13, [#allocation2]
  %s25 = smul.u32 2, 1
  %s26 = smul.u32 %s25, 8
  %s27 = sshll.u32 %s26, 4
  %28 = dma.done [#allocation2], %s27
  %29 = vsyncmov [#allocation2]
  %s30 = vpop.sfrf %29
  %p31 = scmp.eq.s32.totalorder %s30, 0
  %p32 = pneg %p31
  %34 = shalt.err (%p32)

</llo_original>
